<compile_context>
chip_gen: v7x
topology: tpu7x:2x2x1
jax: 0.10.0
libtpu: 0.0.40
codegen_flags: <defaults>
</compile_context>

<pallas_src>
import functools

import jax
import jax.numpy as jnp
from jax.experimental import pallas as pl
from jax.experimental.pallas import tpu as pltpu


def _layernorm_kernel(*refs, bias_free: bool):
    """Per-pixel LayerNorm over channels.

    x_ref: (1, C, tile_hw)  -- C on sublanes, spatial positions on lanes
    w_ref: (C, 1) float32   -- resident, broadcasts over the lane axis
    b_ref: (C, 1) float32   -- only present for the WithBias variant
    o_ref: (1, C, tile_hw)
    """
    if bias_free:
        x_ref, w_ref, o_ref = refs
        b = None
    else:
        x_ref, w_ref, b_ref, o_ref = refs
        b = b_ref[...]                            # (C, 1) f32

    x = x_ref[0].astype(jnp.float32)              # (C, tile_hw)
    w = w_ref[...]                                # (C, 1) f32

    # One-pass moments: mean and mean-of-squares in a single sweep over x.
    mu = jnp.mean(x, axis=0, keepdims=True)       # (1, tile_hw)
    ex2 = jnp.mean(x * x, axis=0, keepdims=True)  # (1, tile_hw)
    var = jnp.maximum(ex2 - mu * mu, 0.0)         # clamp guards f32 cancellation
    inv = jax.lax.rsqrt(var + 1e-5)

    if bias_free:
        y = x * inv * w          # PyTorch BiasFree: x / sqrt(var+eps) * weight
    else:
        y = (x - mu) * inv * w + b
    o_ref[0] = y.astype(o_ref.dtype)


def _vmem_capacity_bytes() -> int:
    """Per-core VMEM capacity; conservative (v7x) fallback if query fails."""
    try:
        info = pltpu.get_tpu_info()
        cap = getattr(info, "vmem_capacity_bytes", None)
        if cap:
            return int(cap)
    except Exception:
        pass
    return 64 * 1024 * 1024


def _choose_tile_hw(hw: int, c: int, itemsize: int, batch: int,
                    vmem_cap: int) -> int:
    """Lane-axis tile size: byte-budget driven (generation-aware), a multiple
    of 128 (unmasked stores) or the full spatial extent, with the f32
    working-copy temporaries accounted for, and enough grid steps kept that
    both v7x TensorCores get work."""
    # ~4 MiB/buffer on v7x (64 MiB VMEM), ~8 MiB/buffer on v5e/v6e (128 MiB).
    per_buf_budget = max(2 * 1024 * 1024, vmem_cap // 16)

    # Bytes per lane column actually occupying VMEM per step: the block itself
    # plus f32 working copies (x_f32, y) when the input is narrower than f32.
    bytes_per_col = c * itemsize
    if itemsize < 4:
        bytes_per_col += 2 * c * 4

    t = per_buf_budget // max(1, bytes_per_col)
    t = max(128, (t // 128) * 128)

    # Keep >= ~4 grid steps so v7x's two TensorCores both get blocks.
    min_steps = 4
    if batch < min_steps:
        needed_tiles = -(-min_steps // batch)          # ceil
        if hw >= needed_tiles * 128:
            t_cap = max(128, (hw // needed_tiles // 128) * 128)
            t = min(t, t_cap)

    if hw % 128 == 0:
        return min(t, hw)
    if hw <= t:
        return hw        # single block == full spatial extent (no 128 constraint)
    return t             # ragged tail handled by Pallas block padding/masking


def layernorm_nchw(x, weight, bias=None, layer_norm_type="WithBias"):
    """LayerNorm over the channel dim of an NCHW tensor (matches the module)."""
    B, C, H, W = x.shape
    HW = H * W
    bias_free = layer_norm_type == "BiasFree"

    itemsize = jnp.dtype(x.dtype).itemsize
    vmem_cap = _vmem_capacity_bytes()
    tile_hw = _choose_tile_hw(HW, C, itemsize, B, vmem_cap)
    grid = (B, pl.cdiv(HW, tile_hw))

    x3 = x.reshape(B, C, HW)                    # free view: no HBM transpose
    w2 = jnp.asarray(weight, dtype=jnp.float32).reshape(C, 1)

    in_specs = [
        pl.BlockSpec((1, C, tile_hw), lambda b, t: (b, 0, t)),  # x tile
        pl.BlockSpec((C, 1), lambda b, t: (0, 0)),              # weight (resident)
    ]
    args = [x3, w2]
    if not bias_free:
        b2 = jnp.asarray(bias, dtype=jnp.float32).reshape(C, 1)
        in_specs.append(pl.BlockSpec((C, 1), lambda b, t: (0, 0)))  # bias (resident)
        args.append(b2)

    kernel = functools.partial(_layernorm_kernel, bias_free=bias_free)

    # VMEM footprint: in + out double-buffered blocks, f32 temporaries, params.
    tile_bytes = C * tile_hw * itemsize
    temp_bytes = 3 * C * tile_hw * 4
    footprint = 4 * tile_bytes + temp_bytes + (1 << 20)
    vmem_limit = max(32 << 20, footprint + (4 << 20))
    vmem_limit = min(vmem_limit, max(vmem_cap - (8 << 20), 32 << 20))

    # Advisory cost estimate: pure streaming, mem-bound.
    cost = pl.CostEstimate(
        flops=8 * B * C * HW,
        transcendentals=B * HW,
        bytes_accessed=2 * B * C * HW * itemsize + 2 * C * 4,
    )

    out3 = pl.pallas_call(
        kernel,
        out_shape=jax.ShapeDtypeStruct((B, C, HW), x.dtype),
        grid=grid,
        in_specs=in_specs,
        out_specs=pl.BlockSpec((1, C, tile_hw), lambda b, t: (b, 0, t)),
        compiler_params=pltpu.CompilerParams(
            dimension_semantics=("parallel", "parallel"),
            vmem_limit_bytes=int(vmem_limit),
        ),
        cost_estimate=cost,
    )(*args)

    return out3.reshape(B, C, H, W)


def _reference_nchw(x, weight, bias, layer_norm_type="WithBias"):
    """Pure-JAX reference mirroring the PyTorch forward."""
    x3 = jnp.transpose(x, (0, 2, 3, 1)).astype(jnp.float32)  # b h w c
    mu = jnp.mean(x3, axis=-1, keepdims=True)
    var = jnp.mean((x3 - mu) ** 2, axis=-1, keepdims=True)
    inv = 1.0 / jnp.sqrt(var + 1e-5)
    if layer_norm_type == "BiasFree":
        y = x3 * inv * weight
    else:
        y = (x3 - mu) * inv * weight + bias
    return jnp.transpose(y, (0, 3, 1, 2)).astype(x.dtype)


if __name__ == "__main__":
    key = jax.random.PRNGKey(0)
    B, C, H, W = 2, 4, 16, 16  # NCHW, as the PyTorch module expects
    x = jax.random.normal(key, (B, C, H, W), dtype=jnp.float32)

    # Deterministic parameter init per the module __init__ (dim = C):
    weight = jnp.ones((C,), dtype=jnp.float32)
    bias = jnp.zeros((C,), dtype=jnp.float32)

    # WithBias variant (default branch when LayerNorm_type != 'BiasFree')
    out = layernorm_nchw(x, weight, bias, layer_norm_type="WithBias")
    out = jax.block_until_ready(out)
    ref = _reference_nchw(x, weight, bias, layer_norm_type="WithBias")
    assert out.shape == (B, C, H, W)
    assert jnp.max(jnp.abs(out - ref)) < 2e-5

    # BiasFree variant (bias is not passed to the kernel at all)
    out_bf = layernorm_nchw(x, weight, layer_norm_type="BiasFree")
    out_bf = jax.block_until_ready(out_bf)
    ref_bf = _reference_nchw(x, weight, bias, layer_norm_type="BiasFree")
    assert jnp.max(jnp.abs(out_bf - ref_bf)) < 2e-5

    print("KERNEL_OK")
</pallas_src>

<mosaic_0001>
module attributes {stable_mosaic.version = 11 : i64} {
  func.func @_layernorm_kernel(%arg0: i32, %arg1: i32, %arg2: memref<1x4x128xf32, #tpu.memory_space<vmem>>, %arg3: memref<4x1xf32, #tpu.memory_space<vmem>>, %arg4: memref<4x1xf32, #tpu.memory_space<vmem>>, %arg5: memref<1x4x128xf32, #tpu.memory_space<vmem>>) attributes {dimension_semantics = [#tpu.dimension_semantics<parallel>, #tpu.dimension_semantics<parallel>], iteration_bounds = array<i64: 2, 2>, scalar_prefetch = 0 : i64, scratch_operands = 0 : i64, tpu.core_type = #tpu.core_type<tc>, window_params = [{transform_indices = @transform_0, window_bounds = array<i64: 1, 4, 128>}, {pipeline_mode = #tpu.pipeline_mode<synchronous>, transform_indices = @transform_1, window_bounds = array<i64: 4, 1>}, {pipeline_mode = #tpu.pipeline_mode<synchronous>, transform_indices = @transform_2, window_bounds = array<i64: 4, 1>}, {transform_indices = @transform_3, window_bounds = array<i64: 1, 4, 128>}]} {
    %c0 = arith.constant 0 : index
    %c0_0 = arith.constant 0 : index
    %0 = vector.load %arg4[%c0, %c0_0] : memref<4x1xf32, #tpu.memory_space<vmem>>, vector<4x1xf32>
    %c0_1 = arith.constant 0 : index
    %c0_2 = arith.constant 0 : index
    %c0_3 = arith.constant 0 : index
    %1 = vector.load %arg2[%c0_1, %c0_2, %c0_3] : memref<1x4x128xf32, #tpu.memory_space<vmem>>, vector<1x4x128xf32>
    %2 = vector.shape_cast %1 : vector<1x4x128xf32> to vector<4x128xf32>
    %c0_4 = arith.constant 0 : index
    %c0_5 = arith.constant 0 : index
    %3 = vector.load %arg3[%c0_4, %c0_5] : memref<4x1xf32, #tpu.memory_space<vmem>>, vector<4x1xf32>
    %cst = arith.constant dense<0.000000e+00> : vector<128xf32>
    %4 = vector.multi_reduction <add>, %2, %cst [0] : vector<4x128xf32> to vector<128xf32>
    %5 = vector.shape_cast %4 : vector<128xf32> to vector<1x128xf32>
    %cst_6 = arith.constant 4.000000e+00 : f32
    %6 = vector.broadcast %cst_6 : f32 to vector<1x128xf32>
    %7 = arith.divf %5, %6 : vector<1x128xf32>
    %8 = arith.mulf %2, %2 : vector<4x128xf32>
    %cst_7 = arith.constant dense<0.000000e+00> : vector<128xf32>
    %9 = vector.multi_reduction <add>, %8, %cst_7 [0] : vector<4x128xf32> to vector<128xf32>
    %10 = vector.shape_cast %9 : vector<128xf32> to vector<1x128xf32>
    %cst_8 = arith.constant 4.000000e+00 : f32
    %11 = vector.broadcast %cst_8 : f32 to vector<1x128xf32>
    %12 = arith.divf %10, %11 : vector<1x128xf32>
    %13 = arith.mulf %7, %7 : vector<1x128xf32>
    %14 = arith.subf %12, %13 : vector<1x128xf32>
    %cst_9 = arith.constant 0.000000e+00 : f32
    %15 = vector.broadcast %cst_9 : f32 to vector<1x128xf32>
    %16 = arith.maximumf %14, %15 : vector<1x128xf32>
    %cst_10 = arith.constant 9.99999974E-6 : f32
    %17 = vector.broadcast %cst_10 : f32 to vector<1x128xf32>
    %18 = arith.addf %16, %17 : vector<1x128xf32>
    %19 = math.rsqrt %18 : vector<1x128xf32>
    %20 = vector.broadcast %7 : vector<1x128xf32> to vector<4x128xf32>
    %21 = arith.subf %2, %20 : vector<4x128xf32>
    %22 = vector.broadcast %19 : vector<1x128xf32> to vector<4x128xf32>
    %23 = arith.mulf %21, %22 : vector<4x128xf32>
    %24 = vector.broadcast %3 : vector<4x1xf32> to vector<4x128xf32>
    %25 = arith.mulf %23, %24 : vector<4x128xf32>
    %26 = vector.broadcast %0 : vector<4x1xf32> to vector<4x128xf32>
    %27 = arith.addf %25, %26 : vector<4x128xf32>
    %c0_11 = arith.constant 0 : index
    %c0_12 = arith.constant 0 : index
    %c0_13 = arith.constant 0 : index
    %28 = vector.load %arg5[%c0_11, %c0_12, %c0_13] : memref<1x4x128xf32, #tpu.memory_space<vmem>>, vector<1x4x128xf32>
    %29 = vector.shape_cast %28 : vector<1x4x128xf32> to vector<4x128xf32>
    %30 = vector.shape_cast %27 : vector<4x128xf32> to vector<1x4x128xf32>
    tpu.vector_store %arg5[%c0_11, %c0_12, %c0_13], %30 {strides = array<i32>} : memref<1x4x128xf32, #tpu.memory_space<vmem>>, vector<1x4x128xf32>,
    return
  }
  func.func @transform_0(%arg0: i32, %arg1: i32) -> (i32, i32, i32) {
    %c0_i32 = arith.constant 0 : i32
    %c0_i32_0 = arith.constant 0 : i32
    return %arg0, %c0_i32, %arg1 : i32, i32, i32
  }
  func.func @transform_1(%arg0: i32, %arg1: i32) -> (i32, i32) {
    %c0_i32 = arith.constant 0 : i32
    %c0_i32_0 = arith.constant 0 : i32
    %c0_i32_1 = arith.constant 0 : i32
    return %c0_i32, %c0_i32_0 : i32, i32
  }
  func.func @transform_2(%arg0: i32, %arg1: i32) -> (i32, i32) {
    %c0_i32 = arith.constant 0 : i32
    %c0_i32_0 = arith.constant 0 : i32
    %c0_i32_1 = arith.constant 0 : i32
    return %c0_i32, %c0_i32_0 : i32, i32
  }
  func.func @transform_3(%arg0: i32, %arg1: i32) -> (i32, i32, i32) {
    %c0_i32 = arith.constant 0 : i32
    %c0_i32_0 = arith.constant 0 : i32
    return %arg0, %c0_i32, %arg1 : i32, i32, i32
  }
}

</mosaic_0001>

<llo_original>
// kernel: tpu_custom_call.1
$region0: #{tpu_custom_call.1}
  #allocation0 [shape = 'u32[]', space=smem, size = 0x4, offset = 0x4, fixed_abs, tag = 'smem constant byte address 0x4 - core index']
  #allocation1 [shape = 'u32[144,128]{1,0:T(1,128)}', space=vmem, size = 0x12000, scoped, tag = 'internal scratch']
  %s0 = inlined_call_operand.hbm [shape: f32[2,4,256], index: 0, kind: input, shape index: {}]
  %s1 = inlined_call_operand.vmem [shape: f32[4,1], index: 1, kind: input, shape index: {}]
  %s2 = inlined_call_operand.vmem [shape: f32[4,1], index: 2, kind: input, shape index: {}]
  %s3 = inlined_call_operand.hbm [shape: f32[2,4,256], index: 3, kind: output, shape index: {}]
  %s4 = sld [smem:[#allocation0]]
  $region49: #{tpu_custom_call.1} parent=0
    _
  %s6 = ssub.s32 1, %s4
  %s7 = scalar_select 0, %s6, %s4
  $region1: #{tpu_custom_call.1} parent=0
    #allocation2 [shape = 'u8[4096]{0}', space=vmem, size = 0x1000, scoped, tag = 'input window, operand 0']
    #allocation3 [shape = 's32[2]{0}', space=sflag, size = 0x8, scoped, tag = 'scoped memory for tpu_custom_call.1']
    #allocation4 [shape = 's32[2]{0}', space=sflag, size = 0x8, scoped, tag = 'scoped memory for tpu_custom_call.1']
    #allocation5 [shape = 'u8[4096]{0}', space=vmem, size = 0x1000, scoped, tag = 'output window, operand 0']
    %8 = vsyncpa [#allocation3], 0
    %s9 = scalar_lea.sflag [#allocation3], 1
    %10 = vsyncpa %s9, 0
    %11 = vsyncpa [#allocation4], 0
    %s12 = scalar_lea.sflag [#allocation4], 1
    %13 = vsyncpa %s12, 0
    loop: start=0, step=1, limit=6
    $region2: #{tpu_custom_call.1} parent=1 // loop_pre_header
      _
    $region3: #{tpu_custom_call.1} parent=1 // loop_header
      %s15 = sphi 0, %s19
      %p16 = scmp.ge.s32.totalorder %s15, 6
      %s22 = sphi 0, %s34
      %s23 = sphi 0, %s30
      %s24 = sphi 0, %s22
      %s25 = sphi 0, %s23
      %s26 = sphi 0, %s24
      %s27 = sphi 0, %s25
      %s39 = sphi 0, %s41
      %s42 = sphi 0, %s39
      %s43 = sphi 0, %s42
      %s59 = sphi 0, %s43
      %s63 = sphi 0, %s63
      %s65 = sphi 0, %s63
      %s66 = sphi 0, %s65
      %s80 = sphi 0, %s66
      %s84 = sphi 0, %s84
      %s86 = sphi 0, %s84
      %s87 = sphi 0, %s86
      %s101 = sphi 0, %s87
      %s109 = sphi 0, %s111
      %s112 = sphi 0, %s109
      %s113 = sphi 0, %s112
      %s129 = sphi 0, %s113
    $region4: #{tpu_custom_call.1} parent=1 // loop_header_branch
      %18 = sbr.rel (%p16) target = $region8
    $region5: #{tpu_custom_call.1} parent=1 // loop_body
      %s20 = ssub.s32 %s15, 1
      %s21 = ssub.s32 %s15, 2
      %s28 = sadd.s32 1, %s23
      %p29 = scmp.ge.s32.totalorder %s28, 2
      %s30 = scalar_select %p29, 0, %s28
      %s31 = sadd.s32 1, %s22
      %s32 = scalar_select %p29, %s31, %s22
      %p33 = scmp.ge.s32.totalorder %s32, 2
      %s34 = scalar_select %p33, 0, %s32
      %s35 = ssub.s32 %s22, %s34
      %s36 = ssub.s32 %s23, %s30
      %s37 = sor.u32 %s35, %s36
      %p38 = scmp.eq.s32.totalorder %s37, 0
      %s40 = sadd.s32 %s39, 1
      %s41 = scalar_select %p38, %s39, %s40
      %p44 = pneg %p38
      %p45 = scmp.eq.s32.totalorder %s15, 3
      %p46 = por %p44, %p45
      %p47 = scmp.ne.s32.totalorder %s39, %s42
      %p48 = scmp.eq.s32.totalorder %s15, 0
      %p49 = por %p47, %p48
      %p50 = scmp.ne.s32.totalorder %s39, %s42
      %p51 = scmp.eq.s32.totalorder %s20, 3
      %p52 = por %p50, %p51
      %p53 = scmp.ne.s32.totalorder %s42, %s43
      %p54 = scmp.eq.s32.totalorder %s20, 0
      %p55 = por %p53, %p54
      %p56 = scmp.ne.s32.totalorder %s42, %s43
      %p57 = scmp.eq.s32.totalorder %s21, 3
      %p58 = por %p56, %p57
      %p60 = scmp.ne.s32.totalorder %s43, %s59
      %p61 = scmp.eq.s32.totalorder %s21, 0
      %p62 = por %p60, %p61
      %s64 = sadd.s32 %s63, 1
      %p67 = scmp.eq.s32.totalorder %s15, 3
      %p68 = scmp.ne.s32.totalorder %s63, %s65
      %p69 = scmp.eq.s32.totalorder %s15, 0
      %p70 = por %p68, %p69
      %p71 = scmp.ne.s32.totalorder %s63, %s65
      %p72 = scmp.eq.s32.totalorder %s20, 3
      %p73 = por %p71, %p72
      %p74 = scmp.ne.s32.totalorder %s65, %s66
      %p75 = scmp.eq.s32.totalorder %s20, 0
      %p76 = por %p74, %p75
      %p77 = scmp.ne.s32.totalorder %s65, %s66
      %p78 = scmp.eq.s32.totalorder %s21, 3
      %p79 = por %p77, %p78
      %p81 = scmp.ne.s32.totalorder %s66, %s80
      %p82 = scmp.eq.s32.totalorder %s21, 0
      %p83 = por %p81, %p82
      %s85 = sadd.s32 %s84, 1
      %p88 = scmp.eq.s32.totalorder %s15, 3
      %p89 = scmp.ne.s32.totalorder %s84, %s86
      %p90 = scmp.eq.s32.totalorder %s15, 0
      %p91 = por %p89, %p90
      %p92 = scmp.ne.s32.totalorder %s84, %s86
      %p93 = scmp.eq.s32.totalorder %s20, 3
      %p94 = por %p92, %p93
      %p95 = scmp.ne.s32.totalorder %s86, %s87
      %p96 = scmp.eq.s32.totalorder %s20, 0
      %p97 = por %p95, %p96
      %p98 = scmp.ne.s32.totalorder %s86, %s87
      %p99 = scmp.eq.s32.totalorder %s21, 3
      %p100 = por %p98, %p99
      %p102 = scmp.ne.s32.totalorder %s87, %s101
      %p103 = scmp.eq.s32.totalorder %s21, 0
      %p104 = por %p102, %p103
      %s105 = ssub.s32 %s22, %s34
      %s106 = ssub.s32 %s23, %s30
      %s107 = sor.u32 %s105, %s106
      %p108 = scmp.eq.s32.totalorder %s107, 0
      %s110 = sadd.s32 %s109, 1
      %s111 = scalar_select %p108, %s109, %s110
      %p114 = pneg %p108
      %p115 = scmp.eq.s32.totalorder %s15, 3
      %p116 = por %p114, %p115
      %p117 = scmp.ne.s32.totalorder %s109, %s112
      %p118 = scmp.eq.s32.totalorder %s15, 0
      %p119 = por %p117, %p118
      %p120 = scmp.ne.s32.totalorder %s109, %s112
      %p121 = scmp.eq.s32.totalorder %s20, 3
      %p122 = por %p120, %p121
      %p123 = scmp.ne.s32.totalorder %s112, %s113
      %p124 = scmp.eq.s32.totalorder %s20, 0
      %p125 = por %p123, %p124
      %p126 = scmp.ne.s32.totalorder %s112, %s113
      %p127 = scmp.eq.s32.totalorder %s21, 3
      %p128 = por %p126, %p127
      %p130 = scmp.ne.s32.totalorder %s113, %s129
      %p131 = scmp.eq.s32.totalorder %s21, 0
      %p132 = por %p130, %p131
      %p133 = scmp.le.s32.totalorder 1, %s15
      %p134 = scmp.lt.s32.totalorder %s15, 5
      %p135 = pnand %p133, %p134
      %p136 = pneg %p135
      // Predicated region
      $region9: #{tpu_custom_call.1} parent=5 // pred_check
        _
      $region10: #{tpu_custom_call.1} parent=5 // pred_check_branch
        %138 = sbr.rel (%p135) target = $region12
      $region11: #{tpu_custom_call.1} parent=5 // pred_region
        %s139 = ssub.s32 %s15, 1
        // Predicated region
        $region13: #{tpu_custom_call.1} parent=11 // pred_check
          %p140 = pneg %p76
        $region14: #{tpu_custom_call.1} parent=11 // pred_check_branch
          %142 = sbr.rel (%p140) target = $region16
        $region15: #{tpu_custom_call.1} parent=11 // pred_region
          _
        $region16: #{tpu_custom_call.1} parent=11 // pred_fallthru
          _
        // Predicated region
        $region17: #{tpu_custom_call.1} parent=11 // pred_check
          %p143 = pneg %p97
        $region18: #{tpu_custom_call.1} parent=11 // pred_check_branch
          %145 = sbr.rel (%p143) target = $region20
        $region19: #{tpu_custom_call.1} parent=11 // pred_region
          _
        $region20: #{tpu_custom_call.1} parent=11 // pred_fallthru
          _
      $region12: #{tpu_custom_call.1} parent=5 // pred_fallthru
        _
      %p146 = scmp.lt.s32.totalorder %s15, 4
      // Predicated region
      $region21: #{tpu_custom_call.1} parent=5 // pred_check
        %p147 = pneg %p146
      $region22: #{tpu_custom_call.1} parent=5 // pred_check_branch
        %149 = sbr.rel (%p147) target = $region24
      $region23: #{tpu_custom_call.1} parent=5 // pred_region
        // Predicated region
        $region25: #{tpu_custom_call.1} parent=23 // pred_check
          %p150 = pneg %p49
        $region26: #{tpu_custom_call.1} parent=23 // pred_check_branch
          %152 = sbr.rel (%p150) target = $region28
        $region27: #{tpu_custom_call.1} parent=23 // pred_region
          %s153 = sand.u32 %s39, 1
          %s154 = scalar_lea.sflag [#allocation3], %s153
          %s155 = sand.u32 %s39, 1
          %s156 = smul.addr %s155, 4
          %s157 = scalar_lea.vmem [#allocation2], %s156
          %s159 = ssub.s32 64, 64
          %160 = vsyncadd %s154, %s159
          %s161 = smul.addr %s22, 2
          %s162 = sadd.s32 %s23, %s161
          %s163 = smul.addr %s162, 64
          %s164 = scalar_lea.hbm %s0, %s163
          %s166 = sshll.u32 %s157, 4
          %s167 = int_to_ptr.vmem [resolvable:$true] %s166
          %169 = dma.hbm_to_vmem [thread:$0]  %s164, 64, %s167, %s154
        $region28: #{tpu_custom_call.1} parent=23 // pred_fallthru
          _
      $region24: #{tpu_custom_call.1} parent=5 // pred_fallthru
        _
      %p170 = scmp.le.s32.totalorder 1, %s15
      %p171 = scmp.lt.s32.totalorder %s15, 5
      %p172 = pnand %p170, %p171
      %p173 = pneg %p172
      // Predicated region
      $region29: #{tpu_custom_call.1} parent=5 // pred_check
        _
      $region30: #{tpu_custom_call.1} parent=5 // pred_check_branch
        %175 = sbr.rel (%p172) target = $region32
      $region31: #{tpu_custom_call.1} parent=5 // pred_region
        %s176 = ssub.s32 %s15, 1
        %s177 = sand.u32 %s42, 1
        %s178 = scalar_lea.sflag [#allocation3], %s177
        %s179 = sand.u32 %s42, 1
        %s180 = smul.addr %s179, 4
        %s181 = scalar_lea.vmem [#allocation2], %s180
        // Predicated region
        $region33: #{tpu_custom_call.1} parent=31 // pred_check
          %p182 = pneg %p55
        $region34: #{tpu_custom_call.1} parent=31 // pred_check_branch
          %184 = sbr.rel (%p182) target = $region36
        $region35: #{tpu_custom_call.1} parent=31 // pred_region
          %185 = dma.done %s178, 64
        $region36: #{tpu_custom_call.1} parent=31 // pred_fallthru
          _
        %s186 = sand.u32 %s42, 1
        %s187 = scalar_lea.sflag [#allocation3], %s186
        %s188 = sand.u32 %s42, 1
        %s189 = smul.addr %s188, 4
        %s190 = scalar_lea.vmem [#allocation2], %s189
        %p191 = pneg %p55
        %p192 = pneg %p52
        %p193 = pneg %p76
        %p194 = pneg %p73
        %p195 = pneg %p97
        %p196 = pneg %p94
        %p197 = pneg %p125
        %p198 = pneg %p122
        %s199 = sand.u32 %s112, 1
        %s200 = scalar_lea.sflag [#allocation4], %s199
        %s201 = sand.u32 %s112, 1
        %s202 = smul.addr %s201, 4
        %s203 = scalar_lea.vmem [#allocation5], %s202
        %v204 = vld [vmem:[%s2] sm:$0xf]
        %v205 = vld [vmem:[%s181] sm:$0xf]
        %v206 = vld [vmem:[%s1] sm:$0xf]
        %vm207 = vcmask 1043456
        %v208 = vsel %vm207, %v205, 0.0
        %v209 = vrot.slane %v208, 4
        %v210 = vadd.f32 %v208, %v209
        %v211 = vrot.slane %v210, 2
        %v212 = vadd.f32 %v210, %v211
        %v213 = vrot.slane %v212, 1
        %v214 = vadd.f32 %v212, %v213
        %v215 = vrcp.pop 4.0
        %v216 = vmul.f32 %v214, %v215
        %v217 = vmul.f32 %v205, %v205
        %v218 = vsel %vm207, %v217, 0.0
        %v219 = vrot.slane %v218, 4
        %v220 = vadd.f32 %v218, %v219
        %v221 = vrot.slane %v220, 2
        %v222 = vadd.f32 %v220, %v221
        %v223 = vrot.slane %v222, 1
        %v224 = vadd.f32 %v222, %v223
        %v225 = vmul.f32 %v224, %v215
        %v226 = vmul.f32 %v216, %v216
        %v227 = vsub.f32 %v225, %v226
        %v228 = vmax.f32 %v227, 0.0
        %v229 = vadd.f32 %v228, 1e-05
        %v230 = vrsqrt.pop %v229
        %v231 = vsub.f32 %v205, %v216
        %v232 = vmul.f32 %v231, %v230
        %234 = vset.pattern.permute.xlu0 0
        %235 = vperm.xlu0 %234, %v206
        %v236 = vpop.permute.xlu0 %235
        %v238 = vmul.f32 %v232, %v236
        %240 = vset.pattern.permute.xlu0 0
        %241 = vperm.xlu0 %240, %v204
        %v242 = vpop.permute.xlu0 %241
        %v244 = vadd.f32 %v238, %v242
        %245 = vst [vmem:[%s203] sm:$0xf] %v244
        %s246 = sand.u32 %s112, 1
        %s247 = scalar_lea.sflag [#allocation4], %s246
        %s248 = sand.u32 %s112, 1
        %s249 = smul.addr %s248, 4
        %s250 = scalar_lea.vmem [#allocation5], %s249
        // Predicated region
        $region37: #{tpu_custom_call.1} parent=31 // pred_check
          %p251 = pneg %p122
        $region38: #{tpu_custom_call.1} parent=31 // pred_check_branch
          %253 = sbr.rel (%p251) target = $region40
        $region39: #{tpu_custom_call.1} parent=31 // pred_region
          %s255 = ssub.s32 64, 64
          %256 = vsyncadd %s247, %s255
          %s257 = smul.addr %s24, 2
          %s258 = sadd.s32 %s25, %s257
          %s259 = smul.addr %s258, 64
          %s260 = scalar_lea.hbm %s3, %s259
          %s262 = sshll.u32 %s250, 4
          %s263 = int_to_ptr.vmem [resolvable:$true] %s262
          %265 = dma.vmem_to_hbm [thread:$0]  %s263, 64, %s260, %s247
        $region40: #{tpu_custom_call.1} parent=31 // pred_fallthru
          _
      $region32: #{tpu_custom_call.1} parent=5 // pred_fallthru
        _
      %p266 = scmp.le.s32.totalorder 2, %s15
      // Predicated region
      $region41: #{tpu_custom_call.1} parent=5 // pred_check
        %p267 = pneg %p266
      $region42: #{tpu_custom_call.1} parent=5 // pred_check_branch
        %269 = sbr.rel (%p267) target = $region44
      $region43: #{tpu_custom_call.1} parent=5 // pred_region
        %s270 = ssub.s32 %s15, 2
        // Predicated region
        $region45: #{tpu_custom_call.1} parent=43 // pred_check
          %p271 = pneg %p128
        $region46: #{tpu_custom_call.1} parent=43 // pred_check_branch
          %273 = sbr.rel (%p271) target = $region48
        $region47: #{tpu_custom_call.1} parent=43 // pred_region
          %s274 = sand.u32 %s113, 1
          %s275 = scalar_lea.sflag [#allocation4], %s274
          %s276 = sand.u32 %s113, 1
          %s277 = smul.addr %s276, 4
          %s278 = scalar_lea.vmem [#allocation5], %s277
          %279 = dma.done %s275, 64
        $region48: #{tpu_custom_call.1} parent=43 // pred_fallthru
          _
      $region44: #{tpu_custom_call.1} parent=5 // pred_fallthru
        _
    $region6: #{tpu_custom_call.1} parent=1 // loop_footer
      %s19 = sadd.s32 1, %s15
    $region7: #{tpu_custom_call.1} parent=1 // loop_footer_branch
      %14 = sbr.rel target = $region3
    $region8: #{tpu_custom_call.1} parent=1 // loop_exit
      _
    %280 = vsyncpa [#allocation3], 1
    %s281 = scalar_lea.sflag [#allocation3], 1
    %282 = vsyncpa %s281, 1
    %283 = vsyncpa [#allocation4], 1
    %s284 = scalar_lea.sflag [#allocation4], 1
    %285 = vsyncpa %s284, 1

</llo_original>
